<compile_context>
chip_gen: v7x
topology: tpu7x:2x2x1
jax: 0.10.0
libtpu: 0.0.40
codegen_flags: <defaults>
</compile_context>

<pallas_src>
import jax
import jax.numpy as jnp
from jax.experimental import pallas as pl
from jax.experimental.pallas import tpu as pltpu


def _is_pair(size):
    return size if isinstance(size, tuple) else (size, size)


def _patchify(x, p_h, p_w):
    """rearrange 'b c (p h) (q w) -> b (p q) (h w c)'  (plain-JAX glue)."""
    b, c, H, W = x.shape
    p, q = H // p_h, W // p_w
    x = x.reshape(b, c, p, p_h, q, p_w)           # b c p h q w
    x = jnp.transpose(x, (0, 2, 4, 3, 5, 1))      # b p q h w c
    return x.reshape(b, p * q, p_h * p_w * c)     # b (p q) (h w c)


def _pick_batch_tile(b, P, target_rows=512):
    """Pick a batch tile so each grid step does ~target_rows matmul rows,
    while keeping >=2 grid steps when b >= 2 (v7x has 2 TensorCores)."""
    bt = max(1, min(b, target_rows // max(P, 1)))
    if b >= 2:
        bt = min(bt, max(1, b // 2))
    while b % bt:
        bt -= 1
    return bt


def _embedding_kernel(x_ref, w_ref, cls_ref, pos_ref, o_ref):
    # x_ref:   (Bt*P, F)    flattened patch features (bf16)
    # w_ref:   (F, D)       projection weight (bf16)
    # cls_ref: (1, D)       cls_token + pos_embed[0]          (f32)
    # pos_ref: (P, D)       pos_embed[1:] + bias              (f32)
    # o_ref:   (Bt, P+1, D) output block
    bt, seq, D = o_ref.shape
    P = seq - 1

    # One big MXU matmul over all rows of this tile, f32 accumulation.
    proj = jnp.dot(x_ref[...], w_ref[...],
                   preferred_element_type=jnp.float32)        # (Bt*P, D)
    proj = proj.reshape(bt, P, D) + pos_ref[...][None, :, :]  # add pos(+bias)

    # Direct stores to disjoint slices (no concatenate / temporary).
    o_ref[:, 1:, :] = proj.astype(o_ref.dtype)
    o_ref[:, 0:1, :] = jnp.broadcast_to(
        cls_ref[...].reshape(1, 1, D), (bt, 1, D)).astype(o_ref.dtype)


def embedding_forward(x, weight, bias, cls_token, pos_embed, p_h, p_w,
                      batch_tile=None, compute_dtype=jnp.bfloat16,
                      out_dtype=jnp.float32):
    """Forward pass of the ViT Embedding module (dropout = identity / eval)."""
    b = x.shape[0]
    patches = _patchify(x, p_h, p_w)               # (b, P, F)
    _, P, F = patches.shape
    D = weight.shape[1]

    # Fold the Linear bias into the positional embedding, and pos_embed[0]
    # into the cls token (done once in the wrapper, f32).
    pos_plus = (pos_embed[1:, :].astype(jnp.float32)
                + bias.astype(jnp.float32)[None, :])            # (P, D)
    cls_plus = (cls_token.astype(jnp.float32)
                + pos_embed[0, :].astype(jnp.float32)).reshape(1, D)

    # bf16 matmul operands (f32 accumulation inside the kernel).
    patches_flat = patches.reshape(b * P, F).astype(compute_dtype)
    w = weight.astype(compute_dtype)

    if batch_tile is None:
        batch_tile = _pick_batch_tile(b, P)
    rows_tile = batch_tile * P
    grid = (b // batch_tile,)

    # VMEM budget (double-buffered inputs/outputs), capped for v7x (64 MiB).
    in_bytes = jnp.dtype(compute_dtype).itemsize
    vmem_est = (2 * rows_tile * F * in_bytes            # patch rows
                + 2 * F * D * in_bytes                  # weight
                + (P + 1) * D * 4                       # pos + cls
                + 2 * batch_tile * (P + 1) * D * 4)     # output
    vmem_limit = int(min(max(4 * vmem_est, 16 << 20), 64 << 20))

    out = pl.pallas_call(
        _embedding_kernel,
        out_shape=jax.ShapeDtypeStruct((b, P + 1, D), out_dtype),
        grid_spec=pltpu.PrefetchScalarGridSpec(
            num_scalar_prefetch=0,
            grid=grid,
            in_specs=[
                pl.BlockSpec((rows_tile, F), lambda i: (i, 0)),
                pl.BlockSpec((F, D), lambda i: (0, 0)),
                pl.BlockSpec((1, D), lambda i: (0, 0)),
                pl.BlockSpec((P, D), lambda i: (0, 0)),
            ],
            out_specs=pl.BlockSpec((batch_tile, P + 1, D),
                                   lambda i: (i, 0, 0)),
        ),
        compiler_params=pltpu.CompilerParams(
            dimension_semantics=("parallel",),
            vmem_limit_bytes=vmem_limit),
    )(patches_flat, w, cls_plus, pos_plus)
    return out


if __name__ == "__main__":
    # Small shapes consistent with the module: img 16x16, patch 4x4, d_model 32.
    img_size = 16
    patch_size = 4
    d_model = 32
    batch = 4          # batch_tile=2 -> 2 parallel grid steps, 32-row matmuls

    i_h, i_w = _is_pair(img_size)
    p_h, p_w = _is_pair(patch_size)
    p_num = (i_h // p_h) * (i_w // p_w)           # 16 patches
    p_size = p_h * p_w * 3                        # 48 features per patch

    key = jax.random.PRNGKey(0)
    k_x, k_w, k_b, k_cls, k_pos = jax.random.split(key, 5)

    x = jax.random.normal(k_x, (batch, 3, i_h, i_w), dtype=jnp.float32)

    # Deterministic parameter init (nn.Linear-style uniform; torch.rand-style
    # uniform [0,1) for cls_token / pos_embed).
    bound = 1.0 / (p_size ** 0.5)
    weight = jax.random.uniform(k_w, (p_size, d_model), jnp.float32,
                                minval=-bound, maxval=bound)
    bias = jax.random.uniform(k_b, (d_model,), jnp.float32,
                              minval=-bound, maxval=bound)
    cls_token = jax.random.uniform(k_cls, (d_model,), jnp.float32)
    pos_embed = jax.random.uniform(k_pos, (p_num + 1, d_model), jnp.float32)

    out = embedding_forward(x, weight, bias, cls_token, pos_embed, p_h, p_w)
    out = jax.block_until_ready(out)
    assert out.shape == (batch, p_num + 1, d_model)

    # Reference using the same bf16 matmul operands / f32 accumulation.
    patches_ref = _patchify(x, p_h, p_w)
    proj_ref = jnp.dot(
        patches_ref.reshape(batch * p_num, p_size).astype(jnp.bfloat16),
        weight.astype(jnp.bfloat16),
        preferred_element_type=jnp.float32).reshape(batch, p_num, d_model)
    body_ref = proj_ref + (pos_embed[1:] + bias)[None, :, :]
    cls_rep = jnp.broadcast_to((cls_token + pos_embed[0])[None, None, :],
                               (batch, 1, d_model))
    ref = jnp.concatenate([cls_rep, body_ref], axis=1)
    assert jnp.allclose(out, ref, atol=1e-5, rtol=1e-5)

    # Loose sanity check against the full-f32 module semantics.
    ref_f32 = jnp.concatenate(
        [cls_rep, patches_ref @ weight + bias + pos_embed[None, 1:, :]], axis=1)
    assert jnp.allclose(out, ref_f32, atol=0.25)

    print("KERNEL_OK")
</pallas_src>

<mosaic_0001>
module attributes {stable_mosaic.version = 11 : i64} {
  func.func @_embedding_kernel(%arg0: i32, %arg1: memref<32x48xbf16, #tpu.memory_space<vmem>>, %arg2: memref<48x32xbf16, #tpu.memory_space<vmem>>, %arg3: memref<1x32xf32, #tpu.memory_space<vmem>>, %arg4: memref<16x32xf32, #tpu.memory_space<vmem>>, %arg5: memref<2x17x32xf32, #tpu.memory_space<vmem>>) attributes {dimension_semantics = [#tpu.dimension_semantics<parallel>], iteration_bounds = array<i64: 2>, scalar_prefetch = 0 : i64, scratch_operands = 0 : i64, tpu.core_type = #tpu.core_type<tc>, window_params = [{transform_indices = @transform_0, window_bounds = array<i64: 32, 48>}, {pipeline_mode = #tpu.pipeline_mode<synchronous>, transform_indices = @transform_1, window_bounds = array<i64: 48, 32>}, {pipeline_mode = #tpu.pipeline_mode<synchronous>, transform_indices = @transform_2, window_bounds = array<i64: 1, 32>}, {pipeline_mode = #tpu.pipeline_mode<synchronous>, transform_indices = @transform_3, window_bounds = array<i64: 16, 32>}, {transform_indices = @transform_4, window_bounds = array<i64: 2, 17, 32>}]} {
    %c0 = arith.constant 0 : index
    %c0_0 = arith.constant 0 : index
    %0 = vector.load %arg1[%c0, %c0_0] : memref<32x48xbf16, #tpu.memory_space<vmem>>, vector<32x48xbf16>
    %c0_1 = arith.constant 0 : index
    %c0_2 = arith.constant 0 : index
    %1 = vector.load %arg2[%c0_1, %c0_2] : memref<48x32xbf16, #tpu.memory_space<vmem>>, vector<48x32xbf16>
    %cst = arith.constant dense<0.000000e+00> : vector<32x32xf32>
    %2 = tpu.matmul %0, %1, %cst {dimension_numbers = #tpu.dot_dimension_numbers<[1], [0], [0], [1], [0, 0, 1, 1], [], []>} : vector<32x48xbf16>, vector<48x32xbf16>, vector<32x32xf32> -> vector<32x32xf32>
    %3 = vector.shape_cast %2 : vector<32x32xf32> to vector<2x16x32xf32>
    %c0_3 = arith.constant 0 : index
    %c0_4 = arith.constant 0 : index
    %4 = vector.load %arg4[%c0_3, %c0_4] : memref<16x32xf32, #tpu.memory_space<vmem>>, vector<16x32xf32>
    %5 = vector.shape_cast %4 : vector<16x32xf32> to vector<1x16x32xf32>
    %6 = vector.broadcast %5 : vector<1x16x32xf32> to vector<2x16x32xf32>
    %7 = arith.addf %3, %6 : vector<2x16x32xf32>
    %c0_5 = arith.constant 0 : index
    %c1 = arith.constant 1 : index
    %c0_6 = arith.constant 0 : index
    %8 = vector.load %arg5[%c0_5, %c1, %c0_6] : memref<2x17x32xf32, #tpu.memory_space<vmem>>, vector<2x16x32xf32>
    tpu.vector_store %arg5[%c0_5, %c1, %c0_6], %7 {strides = array<i32>} : memref<2x17x32xf32, #tpu.memory_space<vmem>>, vector<2x16x32xf32>,
    %c0_7 = arith.constant 0 : index
    %c0_8 = arith.constant 0 : index
    %9 = vector.load %arg3[%c0_7, %c0_8] : memref<1x32xf32, #tpu.memory_space<vmem>>, vector<1x32xf32>
    %10 = vector.shape_cast %9 : vector<1x32xf32> to vector<1x1x32xf32>
    %11 = vector.shape_cast %10 : vector<1x1x32xf32> to vector<1x1x32xf32>
    %12 = vector.broadcast %11 : vector<1x1x32xf32> to vector<2x1x32xf32>
    %c0_9 = arith.constant 0 : index
    %c0_10 = arith.constant 0 : index
    %c0_11 = arith.constant 0 : index
    %13 = vector.load %arg5[%c0_9, %c0_10, %c0_11] : memref<2x17x32xf32, #tpu.memory_space<vmem>>, vector<2x1x32xf32>
    tpu.vector_store %arg5[%c0_9, %c0_10, %c0_11], %12 {strides = array<i32>} : memref<2x17x32xf32, #tpu.memory_space<vmem>>, vector<2x1x32xf32>,
    return
  }
  func.func @transform_0(%arg0: i32) -> (i32, i32) {
    %c0_i32 = arith.constant 0 : i32
    %c0_i32_0 = arith.constant 0 : i32
    return %arg0, %c0_i32 : i32, i32
  }
  func.func @transform_1(%arg0: i32) -> (i32, i32) {
    %c0_i32 = arith.constant 0 : i32
    %c0_i32_0 = arith.constant 0 : i32
    %c0_i32_1 = arith.constant 0 : i32
    return %c0_i32, %c0_i32_0 : i32, i32
  }
  func.func @transform_2(%arg0: i32) -> (i32, i32) {
    %c0_i32 = arith.constant 0 : i32
    %c0_i32_0 = arith.constant 0 : i32
    %c0_i32_1 = arith.constant 0 : i32
    return %c0_i32, %c0_i32_0 : i32, i32
  }
  func.func @transform_3(%arg0: i32) -> (i32, i32) {
    %c0_i32 = arith.constant 0 : i32
    %c0_i32_0 = arith.constant 0 : i32
    %c0_i32_1 = arith.constant 0 : i32
    return %c0_i32, %c0_i32_0 : i32, i32
  }
  func.func @transform_4(%arg0: i32) -> (i32, i32, i32) {
    %c0_i32 = arith.constant 0 : i32
    %c0_i32_0 = arith.constant 0 : i32
    %c0_i32_1 = arith.constant 0 : i32
    return %arg0, %c0_i32, %c0_i32_0 : i32, i32, i32
  }
}

</mosaic_0001>

<llo_original>
// kernel: tpu_custom_call.1
$region0: #{tpu_custom_call.1}
  #allocation0 [shape = 'u32[]', space=smem, size = 0x4, offset = 0x4, fixed_abs, tag = 'smem constant byte address 0x4 - core index']
  #allocation1 [shape = 'u32[144,128]{1,0:T(1,128)}', space=vmem, size = 0x12000, scoped, tag = 'internal scratch']
  %s0 = inlined_call_operand.vmem [shape: bf16[64,48], index: 0, kind: input, shape index: {}]
  %s1 = inlined_call_operand.vmem [shape: bf16[48,32], index: 1, kind: input, shape index: {}]
  %s2 = inlined_call_operand.vmem [shape: f32[1,32], index: 2, kind: input, shape index: {}]
  %s3 = inlined_call_operand.vmem [shape: f32[16,32], index: 3, kind: input, shape index: {}]
  %s4 = inlined_call_operand.vmem [shape: f32[4,17,32], index: 4, kind: output, shape index: {}]
  %s5 = sld [smem:[#allocation0]]
  $region49: #{tpu_custom_call.1} parent=0
    _
  %s7 = ssub.s32 1, %s5
  %s8 = scalar_select 0, %s7, %s5
  loop: start=0, step=1, limit=4
  $region2: #{tpu_custom_call.1} parent=0 // loop_pre_header
    _
  $region3: #{tpu_custom_call.1} parent=0 // loop_header
    %s10 = sphi 0, %s14
    %p11 = scmp.ge.s32.totalorder %s10, 4
    %s20 = sphi 0, %s22
    %s23 = sphi 0, %s20
    %s24 = sphi 0, %s23
    %s40 = sphi 0, %s24
    %s44 = sphi 0, %s44
    %s46 = sphi 0, %s44
    %s47 = sphi 0, %s46
    %s61 = sphi 0, %s47
    %s65 = sphi 0, %s65
    %s67 = sphi 0, %s65
    %s68 = sphi 0, %s67
    %s82 = sphi 0, %s68
    %s86 = sphi 0, %s86
    %s88 = sphi 0, %s86
    %s89 = sphi 0, %s88
    %s103 = sphi 0, %s89
    %s109 = sphi 0, %s111
    %s112 = sphi 0, %s109
    %s113 = sphi 0, %s112
    %s129 = sphi 0, %s113
  $region4: #{tpu_custom_call.1} parent=0 // loop_header_branch
    %13 = sbr.rel (%p11) target = $region8
  $region5: #{tpu_custom_call.1} parent=0 // loop_body
    %s15 = ssub.s32 %s10, 1
    %s16 = ssub.s32 %s10, 2
    %s17 = sadd.s32 %s10, 1
    %s18 = ssub.s32 %s10, %s17
    %p19 = scmp.eq.s32.totalorder %s18, 0
    %s21 = sadd.s32 %s20, 1
    %s22 = scalar_select %p19, %s20, %s21
    %p25 = pneg %p19
    %p26 = scmp.eq.s32.totalorder %s10, 1
    %p27 = por %p25, %p26
    %p28 = scmp.ne.s32.totalorder %s20, %s23
    %p29 = scmp.eq.s32.totalorder %s10, 0
    %p30 = por %p28, %p29
    %p31 = scmp.ne.s32.totalorder %s20, %s23
    %p32 = scmp.eq.s32.totalorder %s15, 1
    %p33 = por %p31, %p32
    %p34 = scmp.ne.s32.totalorder %s23, %s24
    %p35 = scmp.eq.s32.totalorder %s15, 0
    %p36 = por %p34, %p35
    %p37 = scmp.ne.s32.totalorder %s23, %s24
    %p38 = scmp.eq.s32.totalorder %s16, 1
    %p39 = por %p37, %p38
    %p41 = scmp.ne.s32.totalorder %s24, %s40
    %p42 = scmp.eq.s32.totalorder %s16, 0
    %p43 = por %p41, %p42
    %s45 = sadd.s32 %s44, 1
    %p48 = scmp.eq.s32.totalorder %s10, 1
    %p49 = scmp.ne.s32.totalorder %s44, %s46
    %p50 = scmp.eq.s32.totalorder %s10, 0
    %p51 = por %p49, %p50
    %p52 = scmp.ne.s32.totalorder %s44, %s46
    %p53 = scmp.eq.s32.totalorder %s15, 1
    %p54 = por %p52, %p53
    %p55 = scmp.ne.s32.totalorder %s46, %s47
    %p56 = scmp.eq.s32.totalorder %s15, 0
    %p57 = por %p55, %p56
    %p58 = scmp.ne.s32.totalorder %s46, %s47
    %p59 = scmp.eq.s32.totalorder %s16, 1
    %p60 = por %p58, %p59
    %p62 = scmp.ne.s32.totalorder %s47, %s61
    %p63 = scmp.eq.s32.totalorder %s16, 0
    %p64 = por %p62, %p63
    %s66 = sadd.s32 %s65, 1
    %p69 = scmp.eq.s32.totalorder %s10, 1
    %p70 = scmp.ne.s32.totalorder %s65, %s67
    %p71 = scmp.eq.s32.totalorder %s10, 0
    %p72 = por %p70, %p71
    %p73 = scmp.ne.s32.totalorder %s65, %s67
    %p74 = scmp.eq.s32.totalorder %s15, 1
    %p75 = por %p73, %p74
    %p76 = scmp.ne.s32.totalorder %s67, %s68
    %p77 = scmp.eq.s32.totalorder %s15, 0
    %p78 = por %p76, %p77
    %p79 = scmp.ne.s32.totalorder %s67, %s68
    %p80 = scmp.eq.s32.totalorder %s16, 1
    %p81 = por %p79, %p80
    %p83 = scmp.ne.s32.totalorder %s68, %s82
    %p84 = scmp.eq.s32.totalorder %s16, 0
    %p85 = por %p83, %p84
    %s87 = sadd.s32 %s86, 1
    %p90 = scmp.eq.s32.totalorder %s10, 1
    %p91 = scmp.ne.s32.totalorder %s86, %s88
    %p92 = scmp.eq.s32.totalorder %s10, 0
    %p93 = por %p91, %p92
    %p94 = scmp.ne.s32.totalorder %s86, %s88
    %p95 = scmp.eq.s32.totalorder %s15, 1
    %p96 = por %p94, %p95
    %p97 = scmp.ne.s32.totalorder %s88, %s89
    %p98 = scmp.eq.s32.totalorder %s15, 0
    %p99 = por %p97, %p98
    %p100 = scmp.ne.s32.totalorder %s88, %s89
    %p101 = scmp.eq.s32.totalorder %s16, 1
    %p102 = por %p100, %p101
    %p104 = scmp.ne.s32.totalorder %s89, %s103
    %p105 = scmp.eq.s32.totalorder %s16, 0
    %p106 = por %p104, %p105
    %s107 = ssub.s32 %s10, %s17
    %p108 = scmp.eq.s32.totalorder %s107, 0
    %s110 = sadd.s32 %s109, 1
    %s111 = scalar_select %p108, %s109, %s110
    %p114 = pneg %p108
    %p115 = scmp.eq.s32.totalorder %s10, 1
    %p116 = por %p114, %p115
    %p117 = scmp.ne.s32.totalorder %s109, %s112
    %p118 = scmp.eq.s32.totalorder %s10, 0
    %p119 = por %p117, %p118
    %p120 = scmp.ne.s32.totalorder %s109, %s112
    %p121 = scmp.eq.s32.totalorder %s15, 1
    %p122 = por %p120, %p121
    %p123 = scmp.ne.s32.totalorder %s112, %s113
    %p124 = scmp.eq.s32.totalorder %s15, 0
    %p125 = por %p123, %p124
    %p126 = scmp.ne.s32.totalorder %s112, %s113
    %p127 = scmp.eq.s32.totalorder %s16, 1
    %p128 = por %p126, %p127
    %p130 = scmp.ne.s32.totalorder %s113, %s129
    %p131 = scmp.eq.s32.totalorder %s16, 0
    %p132 = por %p130, %p131
    %p133 = scmp.le.s32.totalorder 1, %s10
    %p134 = scmp.lt.s32.totalorder %s10, 3
    %p135 = pnand %p133, %p134
    %p136 = pneg %p135
    // Predicated region
    $region9: #{tpu_custom_call.1} parent=5 // pred_check
      _
    $region10: #{tpu_custom_call.1} parent=5 // pred_check_branch
      %138 = sbr.rel (%p135) target = $region12
    $region11: #{tpu_custom_call.1} parent=5 // pred_region
      %s139 = ssub.s32 %s10, 1
      // Predicated region
      $region13: #{tpu_custom_call.1} parent=11 // pred_check
        %p140 = pneg %p57
      $region14: #{tpu_custom_call.1} parent=11 // pred_check_branch
        %142 = sbr.rel (%p140) target = $region16
      $region15: #{tpu_custom_call.1} parent=11 // pred_region
        _
      $region16: #{tpu_custom_call.1} parent=11 // pred_fallthru
        _
      // Predicated region
      $region17: #{tpu_custom_call.1} parent=11 // pred_check
        %p143 = pneg %p78
      $region18: #{tpu_custom_call.1} parent=11 // pred_check_branch
        %145 = sbr.rel (%p143) target = $region20
      $region19: #{tpu_custom_call.1} parent=11 // pred_region
        _
      $region20: #{tpu_custom_call.1} parent=11 // pred_fallthru
        _
      // Predicated region
      $region21: #{tpu_custom_call.1} parent=11 // pred_check
        %p146 = pneg %p99
      $region22: #{tpu_custom_call.1} parent=11 // pred_check_branch
        %148 = sbr.rel (%p146) target = $region24
      $region23: #{tpu_custom_call.1} parent=11 // pred_region
        _
      $region24: #{tpu_custom_call.1} parent=11 // pred_fallthru
        _
    $region12: #{tpu_custom_call.1} parent=5 // pred_fallthru
      _
    %p149 = scmp.lt.s32.totalorder %s10, 2
    // Predicated region
    $region25: #{tpu_custom_call.1} parent=5 // pred_check
      %p150 = pneg %p149
    $region26: #{tpu_custom_call.1} parent=5 // pred_check_branch
      %152 = sbr.rel (%p150) target = $region28
    $region27: #{tpu_custom_call.1} parent=5 // pred_region
      // Predicated region
      $region29: #{tpu_custom_call.1} parent=27 // pred_check
        %p153 = pneg %p30
      $region30: #{tpu_custom_call.1} parent=27 // pred_check_branch
        %155 = sbr.rel (%p153) target = $region32
      $region31: #{tpu_custom_call.1} parent=27 // pred_region
        %s156 = smul.u32 4, %s10
        %p157 = scmp.lt.s32.totalorder %s156, 7
        %s158 = scalar_select %p157, %s156, 7
        %s159 = smul.addr %s158, 4
        %s160 = scalar_lea.vmem %s0, %s159
        %s161 = smul.u32 4, %s10
      $region32: #{tpu_custom_call.1} parent=27 // pred_fallthru
        _
    $region28: #{tpu_custom_call.1} parent=5 // pred_fallthru
      _
    %p162 = scmp.le.s32.totalorder 1, %s10
    %p163 = scmp.lt.s32.totalorder %s10, 3
    %p164 = pnand %p162, %p163
    %p165 = pneg %p164
    // Predicated region
    $region33: #{tpu_custom_call.1} parent=5 // pred_check
      _
    $region34: #{tpu_custom_call.1} parent=5 // pred_check_branch
      %167 = sbr.rel (%p164) target = $region36
    $region35: #{tpu_custom_call.1} parent=5 // pred_region
      %s168 = ssub.s32 %s10, 1
      %s169 = smul.u32 4, %s15
      %p170 = scmp.lt.s32.totalorder %s169, 7
      %s171 = scalar_select %p170, %s169, 7
      %s172 = smul.addr %s171, 4
      %s173 = scalar_lea.vmem %s0, %s172
      %p174 = pneg %p36
      %p175 = pneg %p33
      %p176 = pneg %p57
      %p177 = pneg %p54
      %p178 = pneg %p78
      %p179 = pneg %p75
      %p180 = pneg %p99
      %p181 = pneg %p96
      %p182 = pneg %p125
      %p183 = pneg %p122
      %s184 = smul.u32 2, %s15
      %p185 = scmp.lt.s32.totalorder %s184, 3
      %s186 = scalar_select %p185, %s184, 3
      %s187 = smul.addr %s186, 3
      %s188 = smul.addr %s187, 8
      %s189 = scalar_lea.vmem %s4, %s188
      %s190 = smul.u32 4, %s15
      %p191 = scmp.lt.s32.totalorder %s190, 7
      %s192 = scalar_select %p191, %s190, 7
      %s193 = smul.addr %s192, 4
      %s194 = scalar_lea.vmem %s0, %s193
      %s195 = smul.u32 4, %s15
      %s196 = smul.u32 2, %s15
      %p197 = scmp.lt.s32.totalorder %s196, 3
      %s198 = scalar_select %p197, %s196, 3
      %s199 = smul.addr %s198, 3
      %s200 = smul.addr %s199, 8
      %s201 = scalar_lea.vmem %s4, %s200
      %s202 = smul.u32 2, %s15
      %v204 = vld [vmem:[%s194] sm:$0xf]
      %v205 = vld [vmem:[%s194 + $0x4] sm:$0xf]
      %v206 = vld [vmem:[%s194 + $0x8] sm:$0xf]
      %v207 = vld [vmem:[%s194 + $0xc] sm:$0xf]
      %v208 = vld [vmem:[%s1] sm:$0xf]
      %v209 = vld [vmem:[%s1 + $0x4] sm:$0xf]
      %v210 = vld [vmem:[%s1 + $0x8] sm:$0xf]
      %v211 = vld [vmem:[%s1 + $0xc] sm:$0xf]
      %v212 = vld [vmem:[%s1 + $0x10] sm:$0xf]
      %v213 = vld [vmem:[%s1 + $0x14] sm:$0xf]
      %v218 = vunpack.c.l.b16 %v204
      %v219 = vunpack.c.l.b16 %v205
      %v220 = vunpack.c.l.b16 %v206
      %v221 = vunpack.c.l.b16 %v207
      %v222 = vpack.c.b16 %v219, %v218
      %v223 = vpack.c.b16 %v221, %v220
      %v230 = vunpack.c.l.b16 %v208
      %v231 = vunpack.c.l.b16 %v209
      %v232 = vunpack.c.l.b16 %v210
      %v233 = vunpack.c.l.b16 %v211
      %v234 = vunpack.c.l.b16 %v212
      %v235 = vunpack.c.l.b16 %v213
      %v236 = vpack.c.b16 %v231, %v230
      %v237 = vpack.c.b16 %v233, %v232
      %v238 = vpack.c.b16 %v235, %v234
      %vm242 = vcmask 392192
      %v244 = vsel %vm242, %v222, 0
      %v247 = vsel %vm242, %v223, 0
      %249 = vmatprep.subr.bf16.mxu0 0
      %250 = vmatpush1.bf16.msra.mxu0 %v236
      %251 = vmatprep.subr.bf16.mxu0 0
      %252 = vmatpush1.bf16.msra.mxu0 %v237
      %253 = vmatprep.subr.bf16.mxu0 0
      %254 = vmatpush1.bf16.msra.mxu0 %v238
      %255 = vmatprep.subr.bf16.mxu0 0
      %256 = vmatpush1.bf16.msra.mxu0 0
      %257 = vmatprep.subr.bf16.mxu0 0
      %258 = vmatpush1.bf16.msra.mxu0 0
      %259 = vmatprep.subr.bf16.mxu0 0
      %260 = vmatpush1.bf16.msra.mxu0 0
      %261 = vmatprep.subr.bf16.mxu0 0
      %262 = vmatpush1.bf16.msra.mxu0 0
      %263 = vmatprep.subr.bf16.mxu0 0
      %264 = vmatpush1.bf16.msra.mxu0 0
      %265 = vmatprep.subr.bf16.mxu0 0
      %266 = vmatpush1.bf16.msra.mxu0 0
      %267 = vmatprep.subr.bf16.mxu0 0
      %268 = vmatpush1.bf16.msra.mxu0 0
      %269 = vmatprep.subr.bf16.mxu0 0
      %270 = vmatpush1.bf16.msra.mxu0 0
      %271 = vmatprep.subr.bf16.mxu0 0
      %272 = vmatpush1.bf16.msra.mxu0 0
      %273 = vmatprep.subr.bf16.mxu0 0
      %274 = vmatpush1.bf16.msra.mxu0 0
      %275 = vmatprep.subr.bf16.mxu0 0
      %276 = vmatpush1.bf16.msra.mxu0 0
      %277 = vmatprep.subr.bf16.mxu0 0
      %278 = vmatpush1.bf16.msra.mxu0 0
      %279 = vmatprep.subr.bf16.mxu0 0
      %280 = vmatpush1.bf16.msra.mxu0 0
      %281 = vmatprep.mubr.bf16.mxu0 0
      %282 = vmatmul.mubr.bf16.gmra.mrb[0].mxu0 %v244
      %v283 = vpop.f32.mrb[0].mxu0
      %v284 = vadd.f32 0.0, %v283
      %v285 = vpop.f32.mrb[0].mxu0
      %v286 = vpop.f32.mrb[0].mxu0
      %v287 = vadd.f32 0.0, %v286
      %v288 = vpop.f32.mrb[0].mxu0
      %289 = vmatprep.mubr.bf16.mxu0 0
      %290 = vmatmul.mubr.bf16.gmra.mrb[0].mxu0 %v247
      %v291 = vpop.f32.mrb[0].mxu0
      %v292 = vadd.f32 0.0, %v291
      %v293 = vpop.f32.mrb[0].mxu0
      %v294 = vpop.f32.mrb[0].mxu0
      %v295 = vadd.f32 0.0, %v294
      %v296 = vpop.f32.mrb[0].mxu0
      %297 = vdwg.mxu0
      %v298 = vld [vmem:[%s3] sm:$0xff]
      %v299 = vld [vmem:[%s3 + $0x8] sm:$0xff]
      %v300 = vadd.f32 %v284, %v298
      %v301 = vadd.f32 %v287, %v299
      %v302 = vadd.f32 %v292, %v298
      %v303 = vadd.f32 %v295, %v299
      %vm304 = vcmask 261120
      %305 = vst.msk [vmem:[%s201 + $0x1] sm:$0xff] %vm304, %v300
      %306 = vst.msk [vmem:[%s201 + $0x9] sm:$0xff] %vm304, %v301
      %307 = vst.msk [vmem:[%s201 + $0x19] sm:$0xff] %vm304, %v302
      %308 = vst.msk [vmem:[%s201 + $0x21] sm:$0xff] %vm304, %v303
      %v309 = vld [vmem:[%s2] sm:$0x1]
      %vm310 = vcmask 253952
      %311 = vst.msk [vmem:[%s201] sm:$0x1] %vm310, %v309
      %312 = vst.msk [vmem:[%s201 + $0x18] sm:$0x1] %vm310, %v309
      %s313 = smul.u32 2, %s15
      %p314 = scmp.lt.s32.totalorder %s313, 3
      %s315 = scalar_select %p314, %s313, 3
      %s316 = smul.addr %s315, 3
      %s317 = smul.addr %s316, 8
      %s318 = scalar_lea.vmem %s4, %s317
      // Predicated region
      $region37: #{tpu_custom_call.1} parent=35 // pred_check
        %p319 = pneg %p122
      $region38: #{tpu_custom_call.1} parent=35 // pred_check_branch
        %321 = sbr.rel (%p319) target = $region40
      $region39: #{tpu_custom_call.1} parent=35 // pred_region
        %s322 = smul.u32 2, %s15
      $region40: #{tpu_custom_call.1} parent=35 // pred_fallthru
        _
    $region36: #{tpu_custom_call.1} parent=5 // pred_fallthru
      _
    %p323 = scmp.le.s32.totalorder 2, %s10
    // Predicated region
    $region41: #{tpu_custom_call.1} parent=5 // pred_check
      %p324 = pneg %p323
    $region42: #{tpu_custom_call.1} parent=5 // pred_check_branch
      %326 = sbr.rel (%p324) target = $region44
    $region43: #{tpu_custom_call.1} parent=5 // pred_region
      %s327 = ssub.s32 %s10, 2
      // Predicated region
      $region45: #{tpu_custom_call.1} parent=43 // pred_check
        %p328 = pneg %p128
      $region46: #{tpu_custom_call.1} parent=43 // pred_check_branch
        %330 = sbr.rel (%p328) target = $region48
      $region47: #{tpu_custom_call.1} parent=43 // pred_region
        %s331 = smul.u32 2, %s16
        %p332 = scmp.lt.s32.totalorder %s331, 3
        %s333 = scalar_select %p332, %s331, 3
        %s334 = smul.addr %s333, 3
        %s335 = smul.addr %s334, 8
        %s336 = scalar_lea.vmem %s4, %s335
      $region48: #{tpu_custom_call.1} parent=43 // pred_fallthru
        _
    $region44: #{tpu_custom_call.1} parent=5 // pred_fallthru
      _
  $region6: #{tpu_custom_call.1} parent=0 // loop_footer
    %s14 = sadd.s32 1, %s10
  $region7: #{tpu_custom_call.1} parent=0 // loop_footer_branch
    %9 = sbr.rel target = $region3
  $region8: #{tpu_custom_call.1} parent=0 // loop_exit
    _

</llo_original>
